<compile_context>
chip_gen: v7x
topology: tpu7x:2x2x1
jax: 0.10.0
libtpu: 0.0.40
codegen_flags: <defaults>
</compile_context>

<pallas_src>
import jax
import jax.numpy as jnp
from jax import lax
from jax.experimental import pallas as pl
from jax.experimental.pallas import tpu as pltpu


# ------------------------- Pallas kernel ------------------------------------

_TM_MAX = 256  # rows per M tile (one grid step); multiple tiles -> megacore


def _partition_layers_kernel(h_ref, mask_ref, w_ref, b_ref, out_ref):
    """Runs ALL layers of one model-parallel partition for one M tile.

    h_ref:    [tm, H]    f32  hidden tile
    mask_ref: [tm, 1]    f32  per-row attention mask
    w_ref:    [L, H, H]  bf16 full weight stack of this partition (VMEM resident)
    b_ref:    [L, 1, H]  f32  biases
    out_ref:  [tm, H]    f32
    """
    num_layers = w_ref.shape[0]
    h = h_ref[...]                                   # [tm, H] f32

    def layer(l, h):
        w = w_ref[l]                                 # [H, H] bf16
        b = b_ref[l]                                 # [1, H] f32
        y = jnp.dot(h.astype(jnp.bfloat16), w,
                    preferred_element_type=jnp.float32) + b
        return jnp.maximum(y, 0.0)                   # relu in f32

    h = lax.fori_loop(0, num_layers, layer, h, unroll=True)

    # Mask zeroes whole rows and layers have no cross-row mixing, so applying
    # it once at the end equals applying it every layer (reference semantics).
    out_ref[...] = (h * mask_ref[...]).astype(out_ref.dtype)


def _run_partition_layers_padded(hidden_flat, mask_flat, w_part, b_part, tm):
    """hidden_flat: [Mp, Hp] f32 (Mp % tm == 0, Hp % 128 == 0)."""
    Mp, Hp = hidden_flat.shape
    L = w_part.shape[0]
    grid = (Mp // tm,)
    return pl.pallas_call(
        _partition_layers_kernel,
        out_shape=jax.ShapeDtypeStruct((Mp, Hp), jnp.float32),
        grid_spec=pltpu.PrefetchScalarGridSpec(
            num_scalar_prefetch=0,
            grid=grid,
            in_specs=[
                pl.BlockSpec((tm, Hp), lambda i: (i, 0)),       # hidden tile
                pl.BlockSpec((tm, 1), lambda i: (i, 0)),        # mask tile
                pl.BlockSpec((L, Hp, Hp), lambda i: (0, 0, 0)),  # weights (resident)
                pl.BlockSpec((L, 1, Hp), lambda i: (0, 0, 0)),   # biases  (resident)
            ],
            out_specs=pl.BlockSpec((tm, Hp), lambda i: (i, 0)),
        ),
        # TODO(synk): for production H (e.g. 4096) re-derive tiling for v7x's
        # 64 MiB VMEM: tile the weight K/N dims and set vmem_limit_bytes.
        compiler_params=pltpu.CompilerParams(
            dimension_semantics=("parallel",)),
    )(hidden_flat, mask_flat, w_part, b_part)


@jax.jit
def _partition_forward(hidden_flat, mask_flat, w_part, b_part):
    """Pads to a lane/sublane-dense layout, runs the fused kernel, un-pads."""
    M, H = hidden_flat.shape

    # Lane-dense padding: zero-padded hidden columns stay zero through
    # relu(h @ W + b) because padded W rows/cols and b entries are zero.
    Hp = ((H + 127) // 128) * 128
    if M > _TM_MAX:
        tm = _TM_MAX
    else:
        tm = ((M + 7) // 8) * 8
    Mp = ((M + tm - 1) // tm) * tm

    if (Mp, Hp) != (M, H):
        hidden_flat = jnp.pad(hidden_flat, ((0, Mp - M), (0, Hp - H)))
        mask_flat = jnp.pad(mask_flat, ((0, Mp - M), (0, 0)))
        w_part = jnp.pad(w_part, ((0, 0), (0, Hp - H), (0, Hp - H)))
        b_part = jnp.pad(b_part, ((0, 0), (0, 0), (0, Hp - H)))

    out = _run_partition_layers_padded(hidden_flat, mask_flat, w_part, b_part, tm)
    return out[:M, :H]


# ----------------------- Synthetic NIM client -------------------------------


class FakeNIMClient:
    """Deterministic stand-in for the external NIM inference service."""

    def __init__(self, num_layers=8, hidden=128, vocab=64):
        self.num_layers = num_layers
        self.hidden = hidden
        self.vocab = vocab
        key = jax.random.PRNGKey(0)
        k_emb, k_w, k_b = jax.random.split(key, 3)
        self.embed = jax.random.normal(k_emb, (vocab, hidden), jnp.float32) * 0.1
        # bf16 weights: halves weight DMA volume and doubles MXU throughput.
        self.W = (jax.random.normal(k_w, (num_layers, hidden, hidden),
                                    jnp.float32)
                  * (1.0 / jnp.sqrt(hidden))).astype(jnp.bfloat16)
        self.b = jax.random.normal(k_b, (num_layers, 1, hidden),
                                   jnp.float32) * 0.01
        self._prep_key = None
        self._hidden_flat = None
        self._mask_flat = None

    def get_model_status(self, model_name):
        return {"num_layers": self.num_layers, "model_name": model_name}

    def _prepare_inputs(self, input_ids, attention_mask):
        # Inputs are identical for every partition -> hoist/memoize the
        # embedding lookup and mask flattening (pure glue, plain JAX).
        cache_key = (id(input_ids), id(attention_mask))
        if self._prep_key != cache_key:
            B, S = input_ids.shape
            hidden = jnp.take(self.embed, input_ids, axis=0)     # [B, S, H]
            self._hidden_flat = hidden.reshape(B * S, self.hidden)
            self._mask_flat = attention_mask.astype(jnp.float32).reshape(B * S, 1)
            self._prep_key = cache_key
        return self._hidden_flat, self._mask_flat

    def inference(self, model_name, payload):
        input_ids = payload["input_ids"]            # [B, S] int32
        attention_mask = payload["attention_mask"]  # [B, S] float32
        start_layer = payload["start_layer"]
        end_layer = payload["end_layer"]

        B, S = input_ids.shape
        H = self.hidden
        hidden_flat, mask_flat = self._prepare_inputs(input_ids, attention_mask)

        w_part = self.W[start_layer:end_layer]      # [L_part, H, H] bf16
        b_part = self.b[start_layer:end_layer]      # [L_part, 1, H] f32

        out_flat = _partition_forward(hidden_flat, mask_flat, w_part, b_part)
        hidden_states = out_flat.reshape(B, S, H)

        # Masked mean-pool over the sequence (plain-JAX glue).
        mask3 = attention_mask.astype(jnp.float32)[:, :, None]
        pooled = (hidden_states * mask3).sum(axis=1) / jnp.maximum(
            mask3.sum(axis=1), 1.0)

        return {
            "hidden_states": hidden_states,          # tensor -> concat dim 0
            "pooled_output": pooled,                 # tensor -> concat dim 0
            "states_tuple": (hidden_states,),        # tuple  -> per-elem concat
            "model_name": model_name,                # passthrough (non-tensor)
        }


# ------------------- Model-parallel wrapper (JAX port) ----------------------


class ModelParallelNIMWrapper:
    def __init__(self, nim_client, model_name, num_gpus):
        self.nim_client = nim_client
        self.model_name = model_name
        self.num_gpus = num_gpus
        self.layer_distribution = self._distribute_layers()

    def _distribute_layers(self):
        # Mirrors the PyTorch original: remainder layers (num_layers % num_gpus)
        # are silently dropped, matching the reference semantics.
        model_info = self.nim_client.get_model_status(self.model_name)
        total_layers = model_info["num_layers"]
        layers_per_gpu = total_layers // self.num_gpus
        return [layers_per_gpu] * self.num_gpus

    def forward(self, input_ids, attention_mask):
        partials = []
        for gpu_id in range(self.num_gpus):
            # TODO(synk): per-GPU device placement (`.to(cuda:i)`) has no TPU
            # Pallas equivalent here; all partitions run on the default device.
            start_layer = gpu_id * self.layer_distribution[gpu_id]
            end_layer = start_layer + self.layer_distribution[gpu_id]
            partials.append(self.nim_client.inference(
                self.model_name,
                {
                    "input_ids": input_ids,
                    "attention_mask": attention_mask,
                    "start_layer": start_layer,
                    "end_layer": end_layer,
                },
            ))
        return self._combine_all(partials)

    def _combine_all(self, partials):
        # Single concatenate per key (instead of pairwise) — same result as
        # the reference's iterative _combine_outputs.
        if len(partials) == 1:
            return partials[0]
        combined = {}
        for key, v in partials[0].items():
            if isinstance(v, jnp.ndarray):
                combined[key] = jnp.concatenate([p[key] for p in partials], axis=0)
            elif isinstance(v, tuple):
                combined[key] = tuple(
                    jnp.concatenate([p[key][i] for p in partials], axis=0)
                    for i in range(len(v)))
            else:
                combined[key] = v
        return combined


# --------------------------------- main --------------------------------------


if __name__ == "__main__":
    B, S, H, VOCAB = 2, 8, 128, 64     # H=128 -> lane-dense layout
    NUM_LAYERS, NUM_GPUS = 8, 2

    key = jax.random.PRNGKey(0)
    k_ids, k_mask = jax.random.split(key)
    input_ids = jax.random.randint(k_ids, (B, S), 0, VOCAB, dtype=jnp.int32)
    # attention_mask: ones with a few trailing zeros on the second row
    attention_mask = jnp.ones((B, S), jnp.float32)
    attention_mask = attention_mask.at[1, S - 2:].set(0.0)

    client = FakeNIMClient(num_layers=NUM_LAYERS, hidden=H, vocab=VOCAB)
    wrapper = ModelParallelNIMWrapper(client, "fake-nim-model", NUM_GPUS)

    outputs = wrapper.forward(input_ids, attention_mask)
    jax.block_until_ready(outputs["hidden_states"])
    jax.block_until_ready(outputs["pooled_output"])

    assert outputs["hidden_states"].shape == (NUM_GPUS * B, S, H)
    assert outputs["pooled_output"].shape == (NUM_GPUS * B, H)
    assert outputs["states_tuple"][0].shape == (NUM_GPUS * B, S, H)
    assert outputs["model_name"] == "fake-nim-model"
    # masked rows of the second example must be zero in the hidden states
    assert jnp.allclose(outputs["hidden_states"][1, S - 2:, :], 0.0)

    print("KERNEL_OK")
</pallas_src>

<mosaic_0001>
module attributes {stable_mosaic.version = 11 : i64} {
  func.func @_partition_layers_kernel(%arg0: i32, %arg1: memref<16x128xf32, #tpu.memory_space<vmem>>, %arg2: memref<16x1xf32, #tpu.memory_space<vmem>>, %arg3: memref<4x128x128xbf16, #tpu.memory_space<vmem>>, %arg4: memref<4x1x128xf32, #tpu.memory_space<vmem>>, %arg5: memref<16x128xf32, #tpu.memory_space<vmem>>) attributes {dimension_semantics = [#tpu.dimension_semantics<parallel>], iteration_bounds = array<i64: 1>, scalar_prefetch = 0 : i64, scratch_operands = 0 : i64, tpu.core_type = #tpu.core_type<tc>, window_params = [{transform_indices = @transform_0, window_bounds = array<i64: 16, 128>}, {transform_indices = @transform_1, window_bounds = array<i64: 16, 1>}, {pipeline_mode = #tpu.pipeline_mode<synchronous>, transform_indices = @transform_2, window_bounds = array<i64: 4, 128, 128>}, {pipeline_mode = #tpu.pipeline_mode<synchronous>, transform_indices = @transform_3, window_bounds = array<i64: 4, 1, 128>}, {transform_indices = @transform_4, window_bounds = array<i64: 16, 128>}]} {
    %c0 = arith.constant 0 : index
    %c0_0 = arith.constant 0 : index
    %0 = vector.load %arg1[%c0, %c0_0] : memref<16x128xf32, #tpu.memory_space<vmem>>, vector<16x128xf32>
    %c0_i32 = arith.constant 0 : i32
    %1 = arith.index_cast %c0_i32 : i32 to index
    %c0_1 = arith.constant 0 : index
    %c0_2 = arith.constant 0 : index
    %2 = vector.load %arg3[%1, %c0_1, %c0_2] : memref<4x128x128xbf16, #tpu.memory_space<vmem>>, vector<1x128x128xbf16>
    %3 = vector.shape_cast %2 : vector<1x128x128xbf16> to vector<128x128xbf16>
    %4 = arith.index_cast %c0_i32 : i32 to index
    %c0_3 = arith.constant 0 : index
    %c0_4 = arith.constant 0 : index
    %5 = vector.load %arg4[%4, %c0_3, %c0_4] : memref<4x1x128xf32, #tpu.memory_space<vmem>>, vector<1x1x128xf32>
    %6 = vector.shape_cast %5 : vector<1x1x128xf32> to vector<1x128xf32>
    %7 = arith.truncf %0 : vector<16x128xf32> to vector<16x128xbf16>
    %cst = arith.constant dense<0.000000e+00> : vector<16x128xf32>
    %8 = tpu.matmul %7, %3, %cst {dimension_numbers = #tpu.dot_dimension_numbers<[1], [0], [0], [1], [0, 0, 1, 1], [], []>} : vector<16x128xbf16>, vector<128x128xbf16>, vector<16x128xf32> -> vector<16x128xf32>
    %9 = vector.broadcast %6 : vector<1x128xf32> to vector<16x128xf32>
    %10 = arith.addf %8, %9 : vector<16x128xf32>
    %cst_5 = arith.constant 0.000000e+00 : f32
    %11 = vector.broadcast %cst_5 : f32 to vector<16x128xf32>
    %12 = arith.maximumf %10, %11 : vector<16x128xf32>
    %c1_i32 = arith.constant 1 : i32
    %13 = arith.index_cast %c1_i32 : i32 to index
    %c0_6 = arith.constant 0 : index
    %c0_7 = arith.constant 0 : index
    %14 = vector.load %arg3[%13, %c0_6, %c0_7] : memref<4x128x128xbf16, #tpu.memory_space<vmem>>, vector<1x128x128xbf16>
    %15 = vector.shape_cast %14 : vector<1x128x128xbf16> to vector<128x128xbf16>
    %16 = arith.index_cast %c1_i32 : i32 to index
    %c0_8 = arith.constant 0 : index
    %c0_9 = arith.constant 0 : index
    %17 = vector.load %arg4[%16, %c0_8, %c0_9] : memref<4x1x128xf32, #tpu.memory_space<vmem>>, vector<1x1x128xf32>
    %18 = vector.shape_cast %17 : vector<1x1x128xf32> to vector<1x128xf32>
    %19 = arith.truncf %12 : vector<16x128xf32> to vector<16x128xbf16>
    %cst_10 = arith.constant dense<0.000000e+00> : vector<16x128xf32>
    %20 = tpu.matmul %19, %15, %cst_10 {dimension_numbers = #tpu.dot_dimension_numbers<[1], [0], [0], [1], [0, 0, 1, 1], [], []>} : vector<16x128xbf16>, vector<128x128xbf16>, vector<16x128xf32> -> vector<16x128xf32>
    %21 = vector.broadcast %18 : vector<1x128xf32> to vector<16x128xf32>
    %22 = arith.addf %20, %21 : vector<16x128xf32>
    %cst_11 = arith.constant 0.000000e+00 : f32
    %23 = vector.broadcast %cst_11 : f32 to vector<16x128xf32>
    %24 = arith.maximumf %22, %23 : vector<16x128xf32>
    %c2_i32 = arith.constant 2 : i32
    %25 = arith.index_cast %c2_i32 : i32 to index
    %c0_12 = arith.constant 0 : index
    %c0_13 = arith.constant 0 : index
    %26 = vector.load %arg3[%25, %c0_12, %c0_13] : memref<4x128x128xbf16, #tpu.memory_space<vmem>>, vector<1x128x128xbf16>
    %27 = vector.shape_cast %26 : vector<1x128x128xbf16> to vector<128x128xbf16>
    %28 = arith.index_cast %c2_i32 : i32 to index
    %c0_14 = arith.constant 0 : index
    %c0_15 = arith.constant 0 : index
    %29 = vector.load %arg4[%28, %c0_14, %c0_15] : memref<4x1x128xf32, #tpu.memory_space<vmem>>, vector<1x1x128xf32>
    %30 = vector.shape_cast %29 : vector<1x1x128xf32> to vector<1x128xf32>
    %31 = arith.truncf %24 : vector<16x128xf32> to vector<16x128xbf16>
    %cst_16 = arith.constant dense<0.000000e+00> : vector<16x128xf32>
    %32 = tpu.matmul %31, %27, %cst_16 {dimension_numbers = #tpu.dot_dimension_numbers<[1], [0], [0], [1], [0, 0, 1, 1], [], []>} : vector<16x128xbf16>, vector<128x128xbf16>, vector<16x128xf32> -> vector<16x128xf32>
    %33 = vector.broadcast %30 : vector<1x128xf32> to vector<16x128xf32>
    %34 = arith.addf %32, %33 : vector<16x128xf32>
    %cst_17 = arith.constant 0.000000e+00 : f32
    %35 = vector.broadcast %cst_17 : f32 to vector<16x128xf32>
    %36 = arith.maximumf %34, %35 : vector<16x128xf32>
    %c3_i32 = arith.constant 3 : i32
    %37 = arith.index_cast %c3_i32 : i32 to index
    %c0_18 = arith.constant 0 : index
    %c0_19 = arith.constant 0 : index
    %38 = vector.load %arg3[%37, %c0_18, %c0_19] : memref<4x128x128xbf16, #tpu.memory_space<vmem>>, vector<1x128x128xbf16>
    %39 = vector.shape_cast %38 : vector<1x128x128xbf16> to vector<128x128xbf16>
    %40 = arith.index_cast %c3_i32 : i32 to index
    %c0_20 = arith.constant 0 : index
    %c0_21 = arith.constant 0 : index
    %41 = vector.load %arg4[%40, %c0_20, %c0_21] : memref<4x1x128xf32, #tpu.memory_space<vmem>>, vector<1x1x128xf32>
    %42 = vector.shape_cast %41 : vector<1x1x128xf32> to vector<1x128xf32>
    %43 = arith.truncf %36 : vector<16x128xf32> to vector<16x128xbf16>
    %cst_22 = arith.constant dense<0.000000e+00> : vector<16x128xf32>
    %44 = tpu.matmul %43, %39, %cst_22 {dimension_numbers = #tpu.dot_dimension_numbers<[1], [0], [0], [1], [0, 0, 1, 1], [], []>} : vector<16x128xbf16>, vector<128x128xbf16>, vector<16x128xf32> -> vector<16x128xf32>
    %45 = vector.broadcast %42 : vector<1x128xf32> to vector<16x128xf32>
    %46 = arith.addf %44, %45 : vector<16x128xf32>
    %cst_23 = arith.constant 0.000000e+00 : f32
    %47 = vector.broadcast %cst_23 : f32 to vector<16x128xf32>
    %48 = arith.maximumf %46, %47 : vector<16x128xf32>
    %c4_i32 = arith.constant 4 : i32
    %c0_24 = arith.constant 0 : index
    %c0_25 = arith.constant 0 : index
    %49 = vector.load %arg2[%c0_24, %c0_25] : memref<16x1xf32, #tpu.memory_space<vmem>>, vector<16x1xf32>
    %50 = vector.broadcast %49 : vector<16x1xf32> to vector<16x128xf32>
    %51 = arith.mulf %48, %50 : vector<16x128xf32>
    %c0_26 = arith.constant 0 : index
    %c0_27 = arith.constant 0 : index
    %52 = vector.load %arg5[%c0_26, %c0_27] : memref<16x128xf32, #tpu.memory_space<vmem>>, vector<16x128xf32>
    tpu.vector_store %arg5[%c0_26, %c0_27], %51 {strides = array<i32>} : memref<16x128xf32, #tpu.memory_space<vmem>>, vector<16x128xf32>,
    return
  }
  func.func @transform_0(%arg0: i32) -> (i32, i32) {
    %c0_i32 = arith.constant 0 : i32
    %c0_i32_0 = arith.constant 0 : i32
    return %arg0, %c0_i32 : i32, i32
  }
  func.func @transform_1(%arg0: i32) -> (i32, i32) {
    %c0_i32 = arith.constant 0 : i32
    %c0_i32_0 = arith.constant 0 : i32
    return %arg0, %c0_i32 : i32, i32
  }
  func.func @transform_2(%arg0: i32) -> (i32, i32, i32) {
    %c0_i32 = arith.constant 0 : i32
    %c0_i32_0 = arith.constant 0 : i32
    %c0_i32_1 = arith.constant 0 : i32
    %c0_i32_2 = arith.constant 0 : i32
    return %c0_i32, %c0_i32_0, %c0_i32_1 : i32, i32, i32
  }
  func.func @transform_3(%arg0: i32) -> (i32, i32, i32) {
    %c0_i32 = arith.constant 0 : i32
    %c0_i32_0 = arith.constant 0 : i32
    %c0_i32_1 = arith.constant 0 : i32
    %c0_i32_2 = arith.constant 0 : i32
    return %c0_i32, %c0_i32_0, %c0_i32_1 : i32, i32, i32
  }
  func.func @transform_4(%arg0: i32) -> (i32, i32) {
    %c0_i32 = arith.constant 0 : i32
    %c0_i32_0 = arith.constant 0 : i32
    return %arg0, %c0_i32 : i32, i32
  }
}

</mosaic_0001>

<llo_original>
// kernel: _partition_forward.1
$region0: #{_partition_forward.1}
  #allocation0 [shape = 'u32[]', space=smem, size = 0x4, offset = 0x4, fixed_abs, tag = 'smem constant byte address 0x4 - core index']
  #allocation1 [shape = 'u32[144,128]{1,0:T(1,128)}', space=vmem, size = 0x12000, scoped, tag = 'internal scratch']
  %s0 = inlined_call_operand.vmem [shape: f32[16,128], index: 0, kind: input, shape index: {}]
  %s1 = inlined_call_operand.vmem [shape: f32[16,1], index: 1, kind: input, shape index: {}]
  %s2 = inlined_call_operand.hbm [shape: bf16[4,128,128], index: 2, kind: input, shape index: {}]
  %s3 = inlined_call_operand.vmem [shape: f32[4,1,128], index: 3, kind: input, shape index: {}]
  %s4 = inlined_call_operand.hbm [shape: f32[16,128], index: 4, kind: output, shape index: {}]
  %s5 = sld [smem:[#allocation0]]
  $region30: #{_partition_forward.1} parent=0
    _
  %s7 = ssub.s32 1, %s5
  %s8 = scalar_select 0, %s7, %s5
  $region1: #{_partition_forward.1} parent=0
    #allocation2 [shape = 'u8[131072]{0}', space=vmem, size = 0x20000, scoped, tag = 'input window, operand 2, single buffered']
    #allocation3 [shape = 's32[1]{0}', space=sflag, size = 0x4, scoped, tag = 'scoped memory for _partition_forward.1']
    #allocation4 [shape = 's32[1]{0}', space=sflag, size = 0x4, scoped, tag = 'scoped memory for _partition_forward.1']
    #allocation5 [shape = 'u8[8192]{0}', space=vmem, size = 0x2000, scoped, tag = 'output window, operand 0, single buffered']
    %9 = vsyncpa [#allocation3], 0
    %10 = vsyncpa [#allocation4], 0
    // Predicated region
    $region2: #{_partition_forward.1} parent=1 // pred_check
      _
    $region3: #{_partition_forward.1} parent=1 // pred_check_branch
      %12 = sbr.rel (0) target = $region5
    $region4: #{_partition_forward.1} parent=1 // pred_region
      _
    $region5: #{_partition_forward.1} parent=1 // pred_fallthru
      _
    // Predicated region
    $region6: #{_partition_forward.1} parent=1 // pred_check
      _
    $region7: #{_partition_forward.1} parent=1 // pred_check_branch
      %14 = sbr.rel (0) target = $region9
    $region8: #{_partition_forward.1} parent=1 // pred_region
      _
    $region9: #{_partition_forward.1} parent=1 // pred_fallthru
      _
    // Predicated region
    $region10: #{_partition_forward.1} parent=1 // pred_check
      _
    $region11: #{_partition_forward.1} parent=1 // pred_check_branch
      %16 = sbr.rel (0) target = $region13
    $region12: #{_partition_forward.1} parent=1 // pred_region
      %s18 = ssub.s32 4096, 4096
      %19 = vsyncadd [#allocation3], %s18
      %s20 = sshll.u32 [#allocation2], 4
      %s21 = int_to_ptr.vmem [resolvable:$true] %s20
      %26 = dma.hbm_to_vmem [thread:$0]  %s2, 4096, %s21, [#allocation3], 64, 64, 4
    $region13: #{_partition_forward.1} parent=1 // pred_fallthru
      _
    // Predicated region
    $region14: #{_partition_forward.1} parent=1 // pred_check
      _
    $region15: #{_partition_forward.1} parent=1 // pred_check_branch
      %28 = sbr.rel (0) target = $region17
    $region16: #{_partition_forward.1} parent=1 // pred_region
      _
    $region17: #{_partition_forward.1} parent=1 // pred_fallthru
      _
    // Predicated region
    $region18: #{_partition_forward.1} parent=1 // pred_check
      _
    $region19: #{_partition_forward.1} parent=1 // pred_check_branch
      %30 = sbr.rel (0) target = $region21
    $region20: #{_partition_forward.1} parent=1 // pred_region
      %31 = dma.done [#allocation3], 4096
    $region21: #{_partition_forward.1} parent=1 // pred_fallthru
      _
    %v33 = vld [vmem:[%s0] sm:$0xff]
    %v34 = vld [vmem:[%s0 + $0x8] sm:$0xff]
    %v35 = vld [vmem:[#allocation2] sm:$0xf]
    %v36 = vld [vmem:[#allocation2 + $0x4] sm:$0xf]
    %v37 = vld [vmem:[#allocation2 + $0x8] sm:$0xf]
    %v38 = vld [vmem:[#allocation2 + $0xc] sm:$0xf]
    %v39 = vld [vmem:[#allocation2 + $0x10] sm:$0xf]
    %v40 = vld [vmem:[#allocation2 + $0x14] sm:$0xf]
    %v41 = vld [vmem:[#allocation2 + $0x18] sm:$0xf]
    %v42 = vld [vmem:[#allocation2 + $0x1c] sm:$0xf]
    %v43 = vld [vmem:[#allocation2 + $0x20] sm:$0xf]
    %v44 = vld [vmem:[#allocation2 + $0x24] sm:$0xf]
    %v45 = vld [vmem:[#allocation2 + $0x28] sm:$0xf]
    %v46 = vld [vmem:[#allocation2 + $0x2c] sm:$0xf]
    %v47 = vld [vmem:[#allocation2 + $0x30] sm:$0xf]
    %v48 = vld [vmem:[#allocation2 + $0x34] sm:$0xf]
    %v49 = vld [vmem:[#allocation2 + $0x38] sm:$0xf]
    %v50 = vld [vmem:[#allocation2 + $0x3c] sm:$0xf]
    %v51 = vld [vmem:[%s3] sm:$0x1]
    %v52 = vpack.c.bf16 %v34, %v33
    %v54 = vlaneseq
    %v55 = vshrl.u32 %v54, 7
    %v56 = vsub.s32 0, %v55
    %v57 = vrot.slane %v51, %v56
    %v75 = vunpack.c.l.b16 %v35
    %v76 = vunpack.c.l.b16 %v36
    %v77 = vunpack.c.l.b16 %v37
    %v78 = vunpack.c.l.b16 %v38
    %v79 = vunpack.c.l.b16 %v39
    %v80 = vunpack.c.l.b16 %v40
    %v81 = vunpack.c.l.b16 %v41
    %v82 = vunpack.c.l.b16 %v42
    %v83 = vunpack.c.l.b16 %v43
    %v84 = vunpack.c.l.b16 %v44
    %v85 = vunpack.c.l.b16 %v45
    %v86 = vunpack.c.l.b16 %v46
    %v87 = vunpack.c.l.b16 %v47
    %v88 = vunpack.c.l.b16 %v48
    %v89 = vunpack.c.l.b16 %v49
    %v90 = vunpack.c.l.b16 %v50
    %v91 = vpack.c.b16 %v76, %v75
    %v92 = vpack.c.b16 %v78, %v77
    %v93 = vpack.c.b16 %v80, %v79
    %v94 = vpack.c.b16 %v82, %v81
    %v95 = vpack.c.b16 %v84, %v83
    %v96 = vpack.c.b16 %v86, %v85
    %v97 = vpack.c.b16 %v88, %v87
    %v98 = vpack.c.b16 %v90, %v89
    %107 = vmatprep.subr.bf16.mxu0 0
    %108 = vmatpush1.bf16.msra.mxu0 %v91
    %109 = vmatprep.subr.bf16.mxu0 0
    %110 = vmatpush1.bf16.msra.mxu0 %v92
    %111 = vmatprep.subr.bf16.mxu0 0
    %112 = vmatpush1.bf16.msra.mxu0 %v93
    %113 = vmatprep.subr.bf16.mxu0 0
    %114 = vmatpush1.bf16.msra.mxu0 %v94
    %115 = vmatprep.subr.bf16.mxu0 0
    %116 = vmatpush1.bf16.msra.mxu0 %v95
    %117 = vmatprep.subr.bf16.mxu0 0
    %118 = vmatpush1.bf16.msra.mxu0 %v96
    %119 = vmatprep.subr.bf16.mxu0 0
    %120 = vmatpush1.bf16.msra.mxu0 %v97
    %121 = vmatprep.subr.bf16.mxu0 0
    %122 = vmatpush1.bf16.msra.mxu0 %v98
    %123 = vmatprep.subr.bf16.mxu0 0
    %124 = vmatpush1.bf16.msra.mxu0 0
    %125 = vmatprep.subr.bf16.mxu0 0
    %126 = vmatpush1.bf16.msra.mxu0 0
    %127 = vmatprep.subr.bf16.mxu0 0
    %128 = vmatpush1.bf16.msra.mxu0 0
    %129 = vmatprep.subr.bf16.mxu0 0
    %130 = vmatpush1.bf16.msra.mxu0 0
    %131 = vmatprep.subr.bf16.mxu0 0
    %132 = vmatpush1.bf16.msra.mxu0 0
    %133 = vmatprep.subr.bf16.mxu0 0
    %134 = vmatpush1.bf16.msra.mxu0 0
    %135 = vmatprep.subr.bf16.mxu0 0
    %136 = vmatpush1.bf16.msra.mxu0 0
    %137 = vmatprep.subr.bf16.mxu0 0
    %138 = vmatpush1.bf16.msra.mxu0 0
    %139 = vmatprep.mubr.bf16.mxu0 0
    %140 = vmatmul.mubr.bf16.gmra.mrb[0].mxu0 %v52
    %v141 = vpop.f32.mrb[0].mxu0
    %v142 = vadd.f32 %v57, %v141
    %v143 = vpop.f32.mrb[0].mxu0
    %v144 = vpop.f32.mrb[0].mxu0
    %v145 = vadd.f32 %v57, %v144
    %v146 = vpop.f32.mrb[0].mxu0
    %147 = vdwg.mxu0
    %v148 = vmax.f32 %v142, 0.0
    %v149 = vmax.f32 %v145, 0.0
    %s150 = scalar_lea.vmem [#allocation2], 64
    %v151 = vld [vmem:[%s150] sm:$0xf]
    %v152 = vld [vmem:[%s150 + $0x4] sm:$0xf]
    %v153 = vld [vmem:[%s150 + $0x8] sm:$0xf]
    %v154 = vld [vmem:[%s150 + $0xc] sm:$0xf]
    %v155 = vld [vmem:[%s150 + $0x10] sm:$0xf]
    %v156 = vld [vmem:[%s150 + $0x14] sm:$0xf]
    %v157 = vld [vmem:[%s150 + $0x18] sm:$0xf]
    %v158 = vld [vmem:[%s150 + $0x1c] sm:$0xf]
    %v159 = vld [vmem:[%s150 + $0x20] sm:$0xf]
    %v160 = vld [vmem:[%s150 + $0x24] sm:$0xf]
    %v161 = vld [vmem:[%s150 + $0x28] sm:$0xf]
    %v162 = vld [vmem:[%s150 + $0x2c] sm:$0xf]
    %v163 = vld [vmem:[%s150 + $0x30] sm:$0xf]
    %v164 = vld [vmem:[%s150 + $0x34] sm:$0xf]
    %v165 = vld [vmem:[%s150 + $0x38] sm:$0xf]
    %v166 = vld [vmem:[%s150 + $0x3c] sm:$0xf]
    %s167 = scalar_lea.vmem %s3, 1
    %v168 = vld [vmem:[%s167] sm:$0x1]
    %v169 = vpack.c.bf16 %v149, %v148
    %v171 = vlaneseq
    %v172 = vshrl.u32 %v171, 7
    %v173 = vsub.s32 0, %v172
    %v174 = vrot.slane %v168, %v173
    %v192 = vunpack.c.l.b16 %v151
    %v193 = vunpack.c.l.b16 %v152
    %v194 = vunpack.c.l.b16 %v153
    %v195 = vunpack.c.l.b16 %v154
    %v196 = vunpack.c.l.b16 %v155
    %v197 = vunpack.c.l.b16 %v156
    %v198 = vunpack.c.l.b16 %v157
    %v199 = vunpack.c.l.b16 %v158
    %v200 = vunpack.c.l.b16 %v159
    %v201 = vunpack.c.l.b16 %v160
    %v202 = vunpack.c.l.b16 %v161
    %v203 = vunpack.c.l.b16 %v162
    %v204 = vunpack.c.l.b16 %v163
    %v205 = vunpack.c.l.b16 %v164
    %v206 = vunpack.c.l.b16 %v165
    %v207 = vunpack.c.l.b16 %v166
    %v208 = vpack.c.b16 %v193, %v192
    %v209 = vpack.c.b16 %v195, %v194
    %v210 = vpack.c.b16 %v197, %v196
    %v211 = vpack.c.b16 %v199, %v198
    %v212 = vpack.c.b16 %v201, %v200
    %v213 = vpack.c.b16 %v203, %v202
    %v214 = vpack.c.b16 %v205, %v204
    %v215 = vpack.c.b16 %v207, %v206
    %224 = vmatprep.subr.bf16.mxu0 0
    %225 = vmatpush1.bf16.msra.mxu0 %v208
    %226 = vmatprep.subr.bf16.mxu0 0
    %227 = vmatpush1.bf16.msra.mxu0 %v209
    %228 = vmatprep.subr.bf16.mxu0 0
    %229 = vmatpush1.bf16.msra.mxu0 %v210
    %230 = vmatprep.subr.bf16.mxu0 0
    %231 = vmatpush1.bf16.msra.mxu0 %v211
    %232 = vmatprep.subr.bf16.mxu0 0
    %233 = vmatpush1.bf16.msra.mxu0 %v212
    %234 = vmatprep.subr.bf16.mxu0 0
    %235 = vmatpush1.bf16.msra.mxu0 %v213
    %236 = vmatprep.subr.bf16.mxu0 0
    %237 = vmatpush1.bf16.msra.mxu0 %v214
    %238 = vmatprep.subr.bf16.mxu0 0
    %239 = vmatpush1.bf16.msra.mxu0 %v215
    %240 = vmatprep.subr.bf16.mxu0 0
    %241 = vmatpush1.bf16.msra.mxu0 0
    %242 = vmatprep.subr.bf16.mxu0 0
    %243 = vmatpush1.bf16.msra.mxu0 0
    %244 = vmatprep.subr.bf16.mxu0 0
    %245 = vmatpush1.bf16.msra.mxu0 0
    %246 = vmatprep.subr.bf16.mxu0 0
    %247 = vmatpush1.bf16.msra.mxu0 0
    %248 = vmatprep.subr.bf16.mxu0 0
    %249 = vmatpush1.bf16.msra.mxu0 0
    %250 = vmatprep.subr.bf16.mxu0 0
    %251 = vmatpush1.bf16.msra.mxu0 0
    %252 = vmatprep.subr.bf16.mxu0 0
    %253 = vmatpush1.bf16.msra.mxu0 0
    %254 = vmatprep.subr.bf16.mxu0 0
    %255 = vmatpush1.bf16.msra.mxu0 0
    %256 = vmatprep.mubr.bf16.mxu0 0
    %257 = vmatmul.mubr.bf16.gmra.mrb[0].mxu0 %v169
    %v258 = vpop.f32.mrb[0].mxu0
    %v259 = vadd.f32 %v174, %v258
    %v260 = vpop.f32.mrb[0].mxu0
    %v261 = vpop.f32.mrb[0].mxu0
    %v262 = vadd.f32 %v174, %v261
    %v263 = vpop.f32.mrb[0].mxu0
    %264 = vdwg.mxu0
    %v265 = vmax.f32 %v259, 0.0
    %v266 = vmax.f32 %v262, 0.0
    %s267 = scalar_lea.vmem [#allocation2], 128
    %v268 = vld [vmem:[%s267] sm:$0xf]
    %v269 = vld [vmem:[%s267 + $0x4] sm:$0xf]
    %v270 = vld [vmem:[%s267 + $0x8] sm:$0xf]
    %v271 = vld [vmem:[%s267 + $0xc] sm:$0xf]
    %v272 = vld [vmem:[%s267 + $0x10] sm:$0xf]
    %v273 = vld [vmem:[%s267 + $0x14] sm:$0xf]
    %v274 = vld [vmem:[%s267 + $0x18] sm:$0xf]
    %v275 = vld [vmem:[%s267 + $0x1c] sm:$0xf]
    %v276 = vld [vmem:[%s267 + $0x20] sm:$0xf]
    %v277 = vld [vmem:[%s267 + $0x24] sm:$0xf]
    %v278 = vld [vmem:[%s267 + $0x28] sm:$0xf]
    %v279 = vld [vmem:[%s267 + $0x2c] sm:$0xf]
    %v280 = vld [vmem:[%s267 + $0x30] sm:$0xf]
    %v281 = vld [vmem:[%s267 + $0x34] sm:$0xf]
    %v282 = vld [vmem:[%s267 + $0x38] sm:$0xf]
    %v283 = vld [vmem:[%s267 + $0x3c] sm:$0xf]
    %s284 = scalar_lea.vmem %s3, 2
    %v285 = vld [vmem:[%s284] sm:$0x1]
    %v286 = vpack.c.bf16 %v266, %v265
    %v288 = vlaneseq
    %v289 = vshrl.u32 %v288, 7
    %v290 = vsub.s32 0, %v289
    %v291 = vrot.slane %v285, %v290
    %v309 = vunpack.c.l.b16 %v268
    %v310 = vunpack.c.l.b16 %v269
    %v311 = vunpack.c.l.b16 %v270
    %v312 = vunpack.c.l.b16 %v271
    %v313 = vunpack.c.l.b16 %v272
    %v314 = vunpack.c.l.b16 %v273
    %v315 = vunpack.c.l.b16 %v274
    %v316 = vunpack.c.l.b16 %v275
    %v317 = vunpack.c.l.b16 %v276
    %v318 = vunpack.c.l.b16 %v277
    %v319 = vunpack.c.l.b16 %v278
    %v320 = vunpack.c.l.b16 %v279
    %v321 = vunpack.c.l.b16 %v280
    %v322 = vunpack.c.l.b16 %v281
    %v323 = vunpack.c.l.b16 %v282
    %v324 = vunpack.c.l.b16 %v283
    %v325 = vpack.c.b16 %v310, %v309
    %v326 = vpack.c.b16 %v312, %v311
    %v327 = vpack.c.b16 %v314, %v313
    %v328 = vpack.c.b16 %v316, %v315
    %v329 = vpack.c.b16 %v318, %v317
    %v330 = vpack.c.b16 %v320, %v319
    %v331 = vpack.c.b16 %v322, %v321
    %v332 = vpack.c.b16 %v324, %v323
    %341 = vmatprep.subr.bf16.mxu0 0
    %342 = vmatpush1.bf16.msra.mxu0 %v325
    %343 = vmatprep.subr.bf16.mxu0 0
    %344 = vmatpush1.bf16.msra.mxu0 %v326
    %345 = vmatprep.subr.bf16.mxu0 0
    %346 = vmatpush1.bf16.msra.mxu0 %v327
    %347 = vmatprep.subr.bf16.mxu0 0
    %348 = vmatpush1.bf16.msra.mxu0 %v328
    %349 = vmatprep.subr.bf16.mxu0 0
    %350 = vmatpush1.bf16.msra.mxu0 %v329
    %351 = vmatprep.subr.bf16.mxu0 0
    %352 = vmatpush1.bf16.msra.mxu0 %v330
    %353 = vmatprep.subr.bf16.mxu0 0
    %354 = vmatpush1.bf16.msra.mxu0 %v331
    %355 = vmatprep.subr.bf16.mxu0 0
    %356 = vmatpush1.bf16.msra.mxu0 %v332
    %357 = vmatprep.subr.bf16.mxu0 0
    %358 = vmatpush1.bf16.msra.mxu0 0
    %359 = vmatprep.subr.bf16.mxu0 0
    %360 = vmatpush1.bf16.msra.mxu0 0
    %361 = vmatprep.subr.bf16.mxu0 0
    %362 = vmatpush1.bf16.msra.mxu0 0
    %363 = vmatprep.subr.bf16.mxu0 0
    %364 = vmatpush1.bf16.msra.mxu0 0
    %365 = vmatprep.subr.bf16.mxu0 0
    %366 = vmatpush1.bf16.msra.mxu0 0
    %367 = vmatprep.subr.bf16.mxu0 0
    %368 = vmatpush1.bf16.msra.mxu0 0
    %369 = vmatprep.subr.bf16.mxu0 0
    %370 = vmatpush1.bf16.msra.mxu0 0
    %371 = vmatprep.subr.bf16.mxu0 0
    %372 = vmatpush1.bf16.msra.mxu0 0
    %373 = vmatprep.mubr.bf16.mxu0 0
    %374 = vmatmul.mubr.bf16.gmra.mrb[0].mxu0 %v286
    %v375 = vpop.f32.mrb[0].mxu0
    %v376 = vadd.f32 %v291, %v375
    %v377 = vpop.f32.mrb[0].mxu0
    %v378 = vpop.f32.mrb[0].mxu0
    %v379 = vadd.f32 %v291, %v378
    %v380 = vpop.f32.mrb[0].mxu0
    %381 = vdwg.mxu0
    %v382 = vmax.f32 %v376, 0.0
    %v383 = vmax.f32 %v379, 0.0
    %s384 = scalar_lea.vmem [#allocation2], 192
    %v385 = vld [vmem:[%s384] sm:$0xf]
    %v386 = vld [vmem:[%s384 + $0x4] sm:$0xf]
    %v387 = vld [vmem:[%s384 + $0x8] sm:$0xf]
    %v388 = vld [vmem:[%s384 + $0xc] sm:$0xf]
    %v389 = vld [vmem:[%s384 + $0x10] sm:$0xf]
    %v390 = vld [vmem:[%s384 + $0x14] sm:$0xf]
    %v391 = vld [vmem:[%s384 + $0x18] sm:$0xf]
    %v392 = vld [vmem:[%s384 + $0x1c] sm:$0xf]
    %v393 = vld [vmem:[%s384 + $0x20] sm:$0xf]
    %v394 = vld [vmem:[%s384 + $0x24] sm:$0xf]
    %v395 = vld [vmem:[%s384 + $0x28] sm:$0xf]
    %v396 = vld [vmem:[%s384 + $0x2c] sm:$0xf]
    %v397 = vld [vmem:[%s384 + $0x30] sm:$0xf]
    %v398 = vld [vmem:[%s384 + $0x34] sm:$0xf]
    %v399 = vld [vmem:[%s384 + $0x38] sm:$0xf]
    %v400 = vld [vmem:[%s384 + $0x3c] sm:$0xf]
    %s401 = scalar_lea.vmem %s3, 3
    %v402 = vld [vmem:[%s401] sm:$0x1]
    %v403 = vpack.c.bf16 %v383, %v382
    %v405 = vlaneseq
    %v406 = vshrl.u32 %v405, 7
    %v407 = vsub.s32 0, %v406
    %v408 = vrot.slane %v402, %v407
    %v426 = vunpack.c.l.b16 %v385
    %v427 = vunpack.c.l.b16 %v386
    %v428 = vunpack.c.l.b16 %v387
    %v429 = vunpack.c.l.b16 %v388
    %v430 = vunpack.c.l.b16 %v389
    %v431 = vunpack.c.l.b16 %v390
    %v432 = vunpack.c.l.b16 %v391
    %v433 = vunpack.c.l.b16 %v392
    %v434 = vunpack.c.l.b16 %v393
    %v435 = vunpack.c.l.b16 %v394
    %v436 = vunpack.c.l.b16 %v395
    %v437 = vunpack.c.l.b16 %v396
    %v438 = vunpack.c.l.b16 %v397
    %v439 = vunpack.c.l.b16 %v398
    %v440 = vunpack.c.l.b16 %v399
    %v441 = vunpack.c.l.b16 %v400
    %v442 = vpack.c.b16 %v427, %v426
    %v443 = vpack.c.b16 %v429, %v428
    %v444 = vpack.c.b16 %v431, %v430
    %v445 = vpack.c.b16 %v433, %v432
    %v446 = vpack.c.b16 %v435, %v434
    %v447 = vpack.c.b16 %v437, %v436
    %v448 = vpack.c.b16 %v439, %v438
    %v449 = vpack.c.b16 %v441, %v440
    %458 = vmatprep.subr.bf16.mxu0 0
    %459 = vmatpush1.bf16.msra.mxu0 %v442
    %460 = vmatprep.subr.bf16.mxu0 0
    %461 = vmatpush1.bf16.msra.mxu0 %v443
    %462 = vmatprep.subr.bf16.mxu0 0
    %463 = vmatpush1.bf16.msra.mxu0 %v444
    %464 = vmatprep.subr.bf16.mxu0 0
    %465 = vmatpush1.bf16.msra.mxu0 %v445
    %466 = vmatprep.subr.bf16.mxu0 0
    %467 = vmatpush1.bf16.msra.mxu0 %v446
    %468 = vmatprep.subr.bf16.mxu0 0
    %469 = vmatpush1.bf16.msra.mxu0 %v447
    %470 = vmatprep.subr.bf16.mxu0 0
    %471 = vmatpush1.bf16.msra.mxu0 %v448
    %472 = vmatprep.subr.bf16.mxu0 0
    %473 = vmatpush1.bf16.msra.mxu0 %v449
    %474 = vmatprep.subr.bf16.mxu0 0
    %475 = vmatpush1.bf16.msra.mxu0 0
    %476 = vmatprep.subr.bf16.mxu0 0
    %477 = vmatpush1.bf16.msra.mxu0 0
    %478 = vmatprep.subr.bf16.mxu0 0
    %479 = vmatpush1.bf16.msra.mxu0 0
    %480 = vmatprep.subr.bf16.mxu0 0
    %481 = vmatpush1.bf16.msra.mxu0 0
    %482 = vmatprep.subr.bf16.mxu0 0
    %483 = vmatpush1.bf16.msra.mxu0 0
    %484 = vmatprep.subr.bf16.mxu0 0
    %485 = vmatpush1.bf16.msra.mxu0 0
    %486 = vmatprep.subr.bf16.mxu0 0
    %487 = vmatpush1.bf16.msra.mxu0 0
    %488 = vmatprep.subr.bf16.mxu0 0
    %489 = vmatpush1.bf16.msra.mxu0 0
    %490 = vmatprep.mubr.bf16.mxu0 0
    %491 = vmatmul.mubr.bf16.gmra.mrb[0].mxu0 %v403
    %v492 = vpop.f32.mrb[0].mxu0
    %v493 = vadd.f32 %v408, %v492
    %v494 = vpop.f32.mrb[0].mxu0
    %v495 = vpop.f32.mrb[0].mxu0
    %v496 = vadd.f32 %v408, %v495
    %v497 = vpop.f32.mrb[0].mxu0
    %498 = vdwg.mxu0
    %v499 = vmax.f32 %v493, 0.0
    %v500 = vmax.f32 %v496, 0.0
    %v501 = vld [vmem:[%s1] sm:$0xff]
    %v502 = vld [vmem:[%s1 + $0x8] sm:$0xff]
    %504 = vset.pattern.permute.xlu0 0
    %505 = vperm.xlu0 %504, %v501
    %v506 = vpop.permute.xlu0 %505
    %509 = vset.pattern.permute.xlu0 0
    %510 = vperm.xlu0 %509, %v502
    %v511 = vpop.permute.xlu0 %510
    %v513 = vmul.f32 %v499, %v506
    %v514 = vmul.f32 %v500, %v511
    %515 = vst [vmem:[#allocation5] sm:$0xff] %v513
    %516 = vst [vmem:[#allocation5 + $0x8] sm:$0xff] %v514
    // Predicated region
    $region22: #{_partition_forward.1} parent=1 // pred_check
      _
    $region23: #{_partition_forward.1} parent=1 // pred_check_branch
      %518 = sbr.rel (0) target = $region25
    $region24: #{_partition_forward.1} parent=1 // pred_region
      %s520 = ssub.s32 256, 256
      %521 = vsyncadd [#allocation4], %s520
      %s522 = sshll.u32 [#allocation5], 4
      %s523 = int_to_ptr.vmem [resolvable:$true] %s522
      %528 = dma.vmem_to_hbm [thread:$0]  %s523, 256, %s4, [#allocation4], 128, 128, 8
    $region25: #{_partition_forward.1} parent=1 // pred_fallthru
      _
    // Predicated region
    $region26: #{_partition_forward.1} parent=1 // pred_check
      _
    $region27: #{_partition_forward.1} parent=1 // pred_check_branch
      %530 = sbr.rel (0) target = $region29
    $region28: #{_partition_forward.1} parent=1 // pred_region
      %531 = dma.done [#allocation4], 256
    $region29: #{_partition_forward.1} parent=1 // pred_fallthru
      _
    %532 = vsyncpa [#allocation3], 1
    %533 = vsyncpa [#allocation4], 1

</llo_original>
